<compile_context>
chip_gen: v7x
topology: tpu7x:2x2x1
jax: 0.10.0
libtpu: 0.0.40
codegen_flags: <defaults>
</compile_context>

<pallas_src>
import jax
import jax.numpy as jnp
from jax.experimental import pallas as pl
from jax.experimental.pallas import tpu as pltpu


def _round_up(v, m):
    return -(-v // m) * m


def _state_update_kernel(x_ref, u_ref, w1x_ref, w1u_ref, b1_ref,
                         wlx_ref, wlu_ref, w2_ref, b2_ref, o_ref):
    # Feature-major tiles: batch on the lane axis, all matmuls (M,K)@(K,N).
    x_t = x_ref[...]                                                    # (n_x, tb)
    u_t = u_ref[...]                                                    # (n_u, tb)

    # hidden layer: Linear -> tanh, f32 accumulation on the MXU, no concat
    pre = (jnp.dot(w1x_ref[...], x_t, preferred_element_type=jnp.float32)
           + jnp.dot(w1u_ref[...], u_t, preferred_element_type=jnp.float32)
           + b1_ref[...])                                               # (H, tb)
    h = jnp.tanh(pre)                                                   # f32, EUP

    # output: bias-free linear branch + MLP output layer, again concat-free
    dx = (jnp.dot(wlx_ref[...], x_t, preferred_element_type=jnp.float32)
          + jnp.dot(wlu_ref[...], u_t, preferred_element_type=jnp.float32)
          + jnp.dot(w2_ref[...], h.astype(w2_ref.dtype),
                    preferred_element_type=jnp.float32)
          + b2_ref[...])                                                # (n_x, tb)
    o_ref[...] = dx.astype(o_ref.dtype)


def neural_lin_state_update_t(x_t, u_t, params, *, tb=None):
    """Feature-major core: x_t (n_x, B), u_t (n_u, B) -> dx_t (n_x, B)."""
    wl, w1, b1, w2, b2 = params  # torch layout: wl (n_x, n_in), w1 (H, n_in), b1 (H,), w2 (n_x, H), b2 (n_x,)
    n_x, B = x_t.shape
    n_u = u_t.shape[0]
    H = w1.shape[0]
    out_dtype = jnp.result_type(x_t.dtype, u_t.dtype, wl.dtype)

    # One-time (tiny) parameter prep: split the would-be concat into per-input
    # weight blocks; biases become broadcastable columns.
    w1x, w1u = w1[:, :n_x], w1[:, n_x:]
    wlx, wlu = wl[:, :n_x], wl[:, n_x:]
    b1c = jnp.reshape(b1, (H, 1))
    b2c = jnp.reshape(b2, (n_x, 1))

    # Batch tiling: one fat lane-dense tile for moderate batches; >= 2 tiles for
    # large batches so v7x can shard the "parallel" grid axis over both TCs.
    if tb is None:
        if B <= 1024:
            tb = B
        else:
            tb = min(8192, _round_up(pl.cdiv(B, 2), 128))
    assert tb == B or tb % 128 == 0, "tb must equal B or be a multiple of 128"
    grid_b = pl.cdiv(B, tb)

    return pl.pallas_call(
        _state_update_kernel,
        out_shape=jax.ShapeDtypeStruct((n_x, B), out_dtype),
        grid_spec=pltpu.PrefetchScalarGridSpec(
            num_scalar_prefetch=0,
            grid=(grid_b,),
            in_specs=[
                pl.BlockSpec((n_x, tb), lambda i: (0, i)),   # x_t tile (lane-dense)
                pl.BlockSpec((n_u, tb), lambda i: (0, i)),   # u_t tile (lane-dense)
                pl.BlockSpec((H, n_x), lambda i: (0, 0)),    # W1[:, :n_x]
                pl.BlockSpec((H, n_u), lambda i: (0, 0)),    # W1[:, n_x:]
                pl.BlockSpec((H, 1), lambda i: (0, 0)),      # b1 column
                pl.BlockSpec((n_x, n_x), lambda i: (0, 0)),  # Wl[:, :n_x]
                pl.BlockSpec((n_x, n_u), lambda i: (0, 0)),  # Wl[:, n_x:]
                pl.BlockSpec((n_x, H), lambda i: (0, 0)),    # W2
                pl.BlockSpec((n_x, 1), lambda i: (0, 0)),    # b2 column
            ],
            out_specs=pl.BlockSpec((n_x, tb), lambda i: (0, i)),
        ),
        compiler_params=pltpu.CompilerParams(
            dimension_semantics=("parallel",)),
    )(x_t, u_t, w1x, w1u, b1c, wlx, wlu, w2, b2c)


def neural_lin_state_update(x, u, params, *, tb=None):
    """Module-matching (batch-major) API: x (B, n_x), u (B, n_u) -> dx (B, n_x).

    The transposes here are tiny (n_x, n_u << 128); callers that keep state
    feature-major (e.g. a fused time-rollout) should call
    neural_lin_state_update_t directly and avoid them entirely.
    """
    dx_t = neural_lin_state_update_t(x.T, u.T, params, tb=tb)
    return dx_t.T


def init_params(key, n_x, n_u, hidden_size, dtype=jnp.float32):
    """Deterministic init matching init_small=True (torch (out, in) layout)."""
    n_in = n_x + n_u
    k1, k2, k3 = jax.random.split(key, 3)
    std = 1e-4
    wl = std * jax.random.normal(k1, (n_x, n_in), dtype)          # lin.weight
    w1 = std * jax.random.normal(k2, (hidden_size, n_in), dtype)  # net.0.weight
    b1 = jnp.zeros((hidden_size,), dtype)                         # net.0.bias
    w2 = std * jax.random.normal(k3, (n_x, hidden_size), dtype)   # net.2.weight
    b2 = jnp.zeros((n_x,), dtype)                                 # net.2.bias
    return (wl, w1, b1, w2, b2)


def reference(x, u, params):
    wl, w1, b1, w2, b2 = params
    xu = jnp.concatenate((x, u), axis=-1)
    dx = xu @ wl.T
    dx = dx + jnp.tanh(xu @ w1.T + b1) @ w2.T + b2
    return dx


if __name__ == "__main__":
    key = jax.random.PRNGKey(0)
    kx, ku, kp, kb1, kb2 = jax.random.split(key, 5)

    # small shapes consistent with the module
    B, n_x, n_u, hidden = 16, 4, 2, 32
    x = jax.random.normal(kx, (B, n_x), jnp.float32)
    u = jax.random.normal(ku, (B, n_u), jnp.float32)
    params = init_params(kp, n_x, n_u, hidden)

    dx = jax.block_until_ready(neural_lin_state_update(x, u, params))
    ref = reference(x, u, params)
    assert dx.shape == (B, n_x)
    assert jnp.allclose(dx, ref, atol=1e-6, rtol=1e-5), "mismatch vs reference (small batch)"

    # exercise non-zero biases + multi-tile grid with a ragged last block
    wl, w1, _, w2, _ = params
    params2 = (wl, w1,
               0.1 * jax.random.normal(kb1, (hidden,), jnp.float32),
               w2,
               0.1 * jax.random.normal(kb2, (n_x,), jnp.float32))
    B2 = 300
    x2 = jax.random.normal(kx, (B2, n_x), jnp.float32)
    u2 = jax.random.normal(ku, (B2, n_u), jnp.float32)
    dx2 = jax.block_until_ready(neural_lin_state_update(x2, u2, params2, tb=128))
    ref2 = reference(x2, u2, params2)
    assert dx2.shape == (B2, n_x)
    assert jnp.allclose(dx2, ref2, atol=1e-6, rtol=1e-5), "mismatch vs reference (tiled batch)"

    print("KERNEL_OK")
</pallas_src>

<mosaic_0001>
module attributes {stable_mosaic.version = 11 : i64} {
  func.func @_state_update_kernel(%arg0: i32, %arg1: memref<4x16xf32, #tpu.memory_space<vmem>>, %arg2: memref<2x16xf32, #tpu.memory_space<vmem>>, %arg3: memref<32x4xf32, #tpu.memory_space<vmem>>, %arg4: memref<32x2xf32, #tpu.memory_space<vmem>>, %arg5: memref<32x1xf32, #tpu.memory_space<vmem>>, %arg6: memref<4x4xf32, #tpu.memory_space<vmem>>, %arg7: memref<4x2xf32, #tpu.memory_space<vmem>>, %arg8: memref<4x32xf32, #tpu.memory_space<vmem>>, %arg9: memref<4x1xf32, #tpu.memory_space<vmem>>, %arg10: memref<4x16xf32, #tpu.memory_space<vmem>>) attributes {dimension_semantics = [#tpu.dimension_semantics<parallel>], iteration_bounds = array<i64: 1>, scalar_prefetch = 0 : i64, scratch_operands = 0 : i64, tpu.core_type = #tpu.core_type<tc>, window_params = [{transform_indices = @transform_0, window_bounds = array<i64: 4, 16>}, {transform_indices = @transform_1, window_bounds = array<i64: 2, 16>}, {pipeline_mode = #tpu.pipeline_mode<synchronous>, transform_indices = @transform_2, window_bounds = array<i64: 32, 4>}, {pipeline_mode = #tpu.pipeline_mode<synchronous>, transform_indices = @transform_3, window_bounds = array<i64: 32, 2>}, {pipeline_mode = #tpu.pipeline_mode<synchronous>, transform_indices = @transform_4, window_bounds = array<i64: 32, 1>}, {pipeline_mode = #tpu.pipeline_mode<synchronous>, transform_indices = @transform_5, window_bounds = array<i64: 4, 4>}, {pipeline_mode = #tpu.pipeline_mode<synchronous>, transform_indices = @transform_6, window_bounds = array<i64: 4, 2>}, {pipeline_mode = #tpu.pipeline_mode<synchronous>, transform_indices = @transform_7, window_bounds = array<i64: 4, 32>}, {pipeline_mode = #tpu.pipeline_mode<synchronous>, transform_indices = @transform_8, window_bounds = array<i64: 4, 1>}, {transform_indices = @transform_9, window_bounds = array<i64: 4, 16>}]} {
    %c0 = arith.constant 0 : index
    %c0_0 = arith.constant 0 : index
    %0 = vector.load %arg1[%c0, %c0_0] : memref<4x16xf32, #tpu.memory_space<vmem>>, vector<4x16xf32>
    %c0_1 = arith.constant 0 : index
    %c0_2 = arith.constant 0 : index
    %1 = vector.load %arg2[%c0_1, %c0_2] : memref<2x16xf32, #tpu.memory_space<vmem>>, vector<2x16xf32>
    %c0_3 = arith.constant 0 : index
    %c0_4 = arith.constant 0 : index
    %2 = vector.load %arg3[%c0_3, %c0_4] : memref<32x4xf32, #tpu.memory_space<vmem>>, vector<32x4xf32>
    %cst = arith.constant dense<0.000000e+00> : vector<32x16xf32>
    %3 = tpu.matmul %2, %0, %cst {dimension_numbers = #tpu.dot_dimension_numbers<[1], [0], [0], [1], [0, 0, 1, 1], [], []>} : vector<32x4xf32>, vector<4x16xf32>, vector<32x16xf32> -> vector<32x16xf32>
    %c0_5 = arith.constant 0 : index
    %c0_6 = arith.constant 0 : index
    %4 = vector.load %arg4[%c0_5, %c0_6] : memref<32x2xf32, #tpu.memory_space<vmem>>, vector<32x2xf32>
    %cst_7 = arith.constant dense<0.000000e+00> : vector<32x16xf32>
    %5 = tpu.matmul %4, %1, %cst_7 {dimension_numbers = #tpu.dot_dimension_numbers<[1], [0], [0], [1], [0, 0, 1, 1], [], []>} : vector<32x2xf32>, vector<2x16xf32>, vector<32x16xf32> -> vector<32x16xf32>
    %6 = arith.addf %3, %5 : vector<32x16xf32>
    %c0_8 = arith.constant 0 : index
    %c0_9 = arith.constant 0 : index
    %7 = vector.load %arg5[%c0_8, %c0_9] : memref<32x1xf32, #tpu.memory_space<vmem>>, vector<32x1xf32>
    %8 = vector.broadcast %7 : vector<32x1xf32> to vector<32x16xf32>
    %9 = arith.addf %6, %8 : vector<32x16xf32>
    %10 = math.tanh %9 : vector<32x16xf32>
    %c0_10 = arith.constant 0 : index
    %c0_11 = arith.constant 0 : index
    %11 = vector.load %arg6[%c0_10, %c0_11] : memref<4x4xf32, #tpu.memory_space<vmem>>, vector<4x4xf32>
    %cst_12 = arith.constant dense<0.000000e+00> : vector<4x16xf32>
    %12 = tpu.matmul %11, %0, %cst_12 {dimension_numbers = #tpu.dot_dimension_numbers<[1], [0], [0], [1], [0, 0, 1, 1], [], []>} : vector<4x4xf32>, vector<4x16xf32>, vector<4x16xf32> -> vector<4x16xf32>
    %c0_13 = arith.constant 0 : index
    %c0_14 = arith.constant 0 : index
    %13 = vector.load %arg7[%c0_13, %c0_14] : memref<4x2xf32, #tpu.memory_space<vmem>>, vector<4x2xf32>
    %cst_15 = arith.constant dense<0.000000e+00> : vector<4x16xf32>
    %14 = tpu.matmul %13, %1, %cst_15 {dimension_numbers = #tpu.dot_dimension_numbers<[1], [0], [0], [1], [0, 0, 1, 1], [], []>} : vector<4x2xf32>, vector<2x16xf32>, vector<4x16xf32> -> vector<4x16xf32>
    %15 = arith.addf %12, %14 : vector<4x16xf32>
    %c0_16 = arith.constant 0 : index
    %c0_17 = arith.constant 0 : index
    %16 = vector.load %arg8[%c0_16, %c0_17] : memref<4x32xf32, #tpu.memory_space<vmem>>, vector<4x32xf32>
    %cst_18 = arith.constant dense<0.000000e+00> : vector<4x16xf32>
    %17 = tpu.matmul %16, %10, %cst_18 {dimension_numbers = #tpu.dot_dimension_numbers<[1], [0], [0], [1], [0, 0, 1, 1], [], []>} : vector<4x32xf32>, vector<32x16xf32>, vector<4x16xf32> -> vector<4x16xf32>
    %18 = arith.addf %15, %17 : vector<4x16xf32>
    %c0_19 = arith.constant 0 : index
    %c0_20 = arith.constant 0 : index
    %19 = vector.load %arg9[%c0_19, %c0_20] : memref<4x1xf32, #tpu.memory_space<vmem>>, vector<4x1xf32>
    %20 = vector.broadcast %19 : vector<4x1xf32> to vector<4x16xf32>
    %21 = arith.addf %18, %20 : vector<4x16xf32>
    %c0_21 = arith.constant 0 : index
    %c0_22 = arith.constant 0 : index
    %22 = vector.load %arg10[%c0_21, %c0_22] : memref<4x16xf32, #tpu.memory_space<vmem>>, vector<4x16xf32>
    tpu.vector_store %arg10[%c0_21, %c0_22], %21 {strides = array<i32>} : memref<4x16xf32, #tpu.memory_space<vmem>>, vector<4x16xf32>,
    return
  }
  func.func @transform_0(%arg0: i32) -> (i32, i32) {
    %c0_i32 = arith.constant 0 : i32
    %c0_i32_0 = arith.constant 0 : i32
    return %c0_i32, %arg0 : i32, i32
  }
  func.func @transform_1(%arg0: i32) -> (i32, i32) {
    %c0_i32 = arith.constant 0 : i32
    %c0_i32_0 = arith.constant 0 : i32
    return %c0_i32, %arg0 : i32, i32
  }
  func.func @transform_2(%arg0: i32) -> (i32, i32) {
    %c0_i32 = arith.constant 0 : i32
    %c0_i32_0 = arith.constant 0 : i32
    %c0_i32_1 = arith.constant 0 : i32
    return %c0_i32, %c0_i32_0 : i32, i32
  }
  func.func @transform_3(%arg0: i32) -> (i32, i32) {
    %c0_i32 = arith.constant 0 : i32
    %c0_i32_0 = arith.constant 0 : i32
    %c0_i32_1 = arith.constant 0 : i32
    return %c0_i32, %c0_i32_0 : i32, i32
  }
  func.func @transform_4(%arg0: i32) -> (i32, i32) {
    %c0_i32 = arith.constant 0 : i32
    %c0_i32_0 = arith.constant 0 : i32
    %c0_i32_1 = arith.constant 0 : i32
    return %c0_i32, %c0_i32_0 : i32, i32
  }
  func.func @transform_5(%arg0: i32) -> (i32, i32) {
    %c0_i32 = arith.constant 0 : i32
    %c0_i32_0 = arith.constant 0 : i32
    %c0_i32_1 = arith.constant 0 : i32
    return %c0_i32, %c0_i32_0 : i32, i32
  }
  func.func @transform_6(%arg0: i32) -> (i32, i32) {
    %c0_i32 = arith.constant 0 : i32
    %c0_i32_0 = arith.constant 0 : i32
    %c0_i32_1 = arith.constant 0 : i32
    return %c0_i32, %c0_i32_0 : i32, i32
  }
  func.func @transform_7(%arg0: i32) -> (i32, i32) {
    %c0_i32 = arith.constant 0 : i32
    %c0_i32_0 = arith.constant 0 : i32
    %c0_i32_1 = arith.constant 0 : i32
    return %c0_i32, %c0_i32_0 : i32, i32
  }
  func.func @transform_8(%arg0: i32) -> (i32, i32) {
    %c0_i32 = arith.constant 0 : i32
    %c0_i32_0 = arith.constant 0 : i32
    %c0_i32_1 = arith.constant 0 : i32
    return %c0_i32, %c0_i32_0 : i32, i32
  }
  func.func @transform_9(%arg0: i32) -> (i32, i32) {
    %c0_i32 = arith.constant 0 : i32
    %c0_i32_0 = arith.constant 0 : i32
    return %c0_i32, %arg0 : i32, i32
  }
}

</mosaic_0001>

<llo_original>
// kernel: tpu_custom_call.1
$region0: #{tpu_custom_call.1}
  #allocation0 [shape = 'u32[]', space=smem, size = 0x4, offset = 0x4, fixed_abs, tag = 'smem constant byte address 0x4 - core index']
  #allocation1 [shape = 'u32[144,128]{1,0:T(1,128)}', space=vmem, size = 0x12000, scoped, tag = 'internal scratch']
  %s0 = inlined_call_operand.vmem [shape: f32[4,16], index: 0, kind: input, shape index: {}]
  %s1 = inlined_call_operand.vmem [shape: f32[2,16], index: 1, kind: input, shape index: {}]
  %s2 = inlined_call_operand.vmem [shape: f32[32,4], index: 2, kind: input, shape index: {}]
  %s3 = inlined_call_operand.vmem [shape: f32[32,2], index: 3, kind: input, shape index: {}]
  %s4 = inlined_call_operand.vmem [shape: f32[32,1], index: 4, kind: input, shape index: {}]
  %s5 = inlined_call_operand.vmem [shape: f32[4,4], index: 5, kind: input, shape index: {}]
  %s6 = inlined_call_operand.vmem [shape: f32[4,2], index: 6, kind: input, shape index: {}]
  %s7 = inlined_call_operand.vmem [shape: f32[4,32], index: 7, kind: input, shape index: {}]
  %s8 = inlined_call_operand.vmem [shape: f32[4,1], index: 8, kind: input, shape index: {}]
  %s9 = inlined_call_operand.hbm [shape: f32[4,16], index: 9, kind: output, shape index: {}]
  %s10 = sld [smem:[#allocation0]]
  $region46: #{tpu_custom_call.1} parent=0
    _
  %s12 = ssub.s32 1, %s10
  %s13 = scalar_select 0, %s12, %s10
  $region1: #{tpu_custom_call.1} parent=0
    #allocation2 [shape = 'u8[2048]{0}', space=vmem, size = 0x800, scoped, tag = 'output window, operand 0, single buffered']
    #allocation3 [shape = 's32[1]{0}', space=sflag, size = 0x4, scoped, tag = 'scoped memory for tpu_custom_call.1']
    %14 = vsyncpa [#allocation3], 0
    // Predicated region
    $region2: #{tpu_custom_call.1} parent=1 // pred_check
      _
    $region3: #{tpu_custom_call.1} parent=1 // pred_check_branch
      %16 = sbr.rel (0) target = $region5
    $region4: #{tpu_custom_call.1} parent=1 // pred_region
      _
    $region5: #{tpu_custom_call.1} parent=1 // pred_fallthru
      _
    // Predicated region
    $region6: #{tpu_custom_call.1} parent=1 // pred_check
      _
    $region7: #{tpu_custom_call.1} parent=1 // pred_check_branch
      %18 = sbr.rel (0) target = $region9
    $region8: #{tpu_custom_call.1} parent=1 // pred_region
      _
    $region9: #{tpu_custom_call.1} parent=1 // pred_fallthru
      _
    // Predicated region
    $region10: #{tpu_custom_call.1} parent=1 // pred_check
      _
    $region11: #{tpu_custom_call.1} parent=1 // pred_check_branch
      %20 = sbr.rel (0) target = $region13
    $region12: #{tpu_custom_call.1} parent=1 // pred_region
      _
    $region13: #{tpu_custom_call.1} parent=1 // pred_fallthru
      _
    // Predicated region
    $region14: #{tpu_custom_call.1} parent=1 // pred_check
      _
    $region15: #{tpu_custom_call.1} parent=1 // pred_check_branch
      %22 = sbr.rel (0) target = $region17
    $region16: #{tpu_custom_call.1} parent=1 // pred_region
      _
    $region17: #{tpu_custom_call.1} parent=1 // pred_fallthru
      _
    // Predicated region
    $region18: #{tpu_custom_call.1} parent=1 // pred_check
      _
    $region19: #{tpu_custom_call.1} parent=1 // pred_check_branch
      %24 = sbr.rel (0) target = $region21
    $region20: #{tpu_custom_call.1} parent=1 // pred_region
      _
    $region21: #{tpu_custom_call.1} parent=1 // pred_fallthru
      _
    // Predicated region
    $region22: #{tpu_custom_call.1} parent=1 // pred_check
      _
    $region23: #{tpu_custom_call.1} parent=1 // pred_check_branch
      %26 = sbr.rel (0) target = $region25
    $region24: #{tpu_custom_call.1} parent=1 // pred_region
      _
    $region25: #{tpu_custom_call.1} parent=1 // pred_fallthru
      _
    // Predicated region
    $region26: #{tpu_custom_call.1} parent=1 // pred_check
      _
    $region27: #{tpu_custom_call.1} parent=1 // pred_check_branch
      %28 = sbr.rel (0) target = $region29
    $region28: #{tpu_custom_call.1} parent=1 // pred_region
      _
    $region29: #{tpu_custom_call.1} parent=1 // pred_fallthru
      _
    // Predicated region
    $region30: #{tpu_custom_call.1} parent=1 // pred_check
      _
    $region31: #{tpu_custom_call.1} parent=1 // pred_check_branch
      %30 = sbr.rel (0) target = $region33
    $region32: #{tpu_custom_call.1} parent=1 // pred_region
      _
    $region33: #{tpu_custom_call.1} parent=1 // pred_fallthru
      _
    // Predicated region
    $region34: #{tpu_custom_call.1} parent=1 // pred_check
      _
    $region35: #{tpu_custom_call.1} parent=1 // pred_check_branch
      %32 = sbr.rel (0) target = $region37
    $region36: #{tpu_custom_call.1} parent=1 // pred_region
      _
    $region37: #{tpu_custom_call.1} parent=1 // pred_fallthru
      _
    %v33 = vld [vmem:[%s0] sm:$0xf]
    %v34 = vld [vmem:[%s1] sm:$0x3]
    %v35 = vld [vmem:[%s2] sm:$0xff]
    %v36 = vld [vmem:[%s2 + $0x8] sm:$0xff]
    %v37 = vld [vmem:[%s2 + $0x10] sm:$0xff]
    %v38 = vld [vmem:[%s2 + $0x18] sm:$0xff]
    %v39 = vld [vmem:[%s3] sm:$0xff]
    %v40 = vld [vmem:[%s3 + $0x8] sm:$0xff]
    %v41 = vld [vmem:[%s3 + $0x10] sm:$0xff]
    %v42 = vld [vmem:[%s3 + $0x18] sm:$0xff]
    %vm43 = vcmask 15360
    %v45 = vsel %vm43, %v39, 0
    %v48 = vsel %vm43, %v40, 0
    %v51 = vsel %vm43, %v41, 0
    %v54 = vsel %vm43, %v42, 0
    %vm56 = vcmask 1041408
    %v58 = vsel %vm56, %v34, 0
    %60 = vmatprep.subr.mxu0 0.0
    %61 = vmatpush1.msra.mxu0 %v58
    %62 = vmatprep.subr.mxu0 0.0
    %63 = vmatpush1.msra.mxu0 0.0
    %64 = vmatprep.subr.mxu0 0.0
    %65 = vmatpush1.msra.mxu0 0.0
    %66 = vmatprep.subr.mxu0 0.0
    %67 = vmatpush1.msra.mxu0 0.0
    %68 = vmatprep.subr.mxu0 0.0
    %69 = vmatpush1.msra.mxu0 0.0
    %70 = vmatprep.subr.mxu0 0.0
    %71 = vmatpush1.msra.mxu0 0.0
    %72 = vmatprep.subr.mxu0 0.0
    %73 = vmatpush1.msra.mxu0 0.0
    %74 = vmatprep.subr.mxu0 0.0
    %75 = vmatpush1.msra.mxu0 0.0
    %76 = vmatprep.subr.mxu0 0.0
    %77 = vmatpush1.msra.mxu0 0.0
    %78 = vmatprep.subr.mxu0 0.0
    %79 = vmatpush1.msra.mxu0 0.0
    %80 = vmatprep.subr.mxu0 0.0
    %81 = vmatpush1.msra.mxu0 0.0
    %82 = vmatprep.subr.mxu0 0.0
    %83 = vmatpush1.msra.mxu0 0.0
    %84 = vmatprep.subr.mxu0 0.0
    %85 = vmatpush1.msra.mxu0 0.0
    %86 = vmatprep.subr.mxu0 0.0
    %87 = vmatpush1.msra.mxu0 0.0
    %88 = vmatprep.subr.mxu0 0.0
    %89 = vmatpush1.msra.mxu0 0.0
    %90 = vmatprep.subr.mxu0 0.0
    %91 = vmatpush1.msra.mxu0 0.0
    %92 = vmatprep.subr.mxu0 0.0
    %93 = vmatpush1.msra.mxu0 0.0
    %94 = vmatprep.subr.mxu0 0.0
    %95 = vmatpush1.msra.mxu0 0.0
    %96 = vmatprep.subr.mxu0 0.0
    %97 = vmatpush1.msra.mxu0 0.0
    %98 = vmatprep.subr.mxu0 0.0
    %99 = vmatpush1.msra.mxu0 0.0
    %100 = vmatprep.subr.mxu0 0.0
    %101 = vmatpush1.msra.mxu0 0.0
    %102 = vmatprep.subr.mxu0 0.0
    %103 = vmatpush1.msra.mxu0 0.0
    %104 = vmatprep.subr.mxu0 0.0
    %105 = vmatpush1.msra.mxu0 0.0
    %106 = vmatprep.subr.mxu0 0.0
    %107 = vmatpush1.msra.mxu0 0.0
    %108 = vmatprep.subr.mxu0 0.0
    %109 = vmatpush1.msra.mxu0 0.0
    %110 = vmatprep.subr.mxu0 0.0
    %111 = vmatpush1.msra.mxu0 0.0
    %112 = vmatprep.subr.mxu0 0.0
    %113 = vmatpush1.msra.mxu0 0.0
    %114 = vmatprep.subr.mxu0 0.0
    %115 = vmatpush1.msra.mxu0 0.0
    %116 = vmatprep.subr.mxu0 0.0
    %117 = vmatpush1.msra.mxu0 0.0
    %118 = vmatprep.subr.mxu0 0.0
    %119 = vmatpush1.msra.mxu0 0.0
    %120 = vmatprep.subr.mxu0 0.0
    %121 = vmatpush1.msra.mxu0 0.0
    %122 = vmatprep.subr.mxu0 0.0
    %123 = vmatpush1.msra.mxu0 0.0
    %124 = vmatprep.mubr.f32.mxu0 0.0
    %125 = vmatmul.mubr.f32.gmra.mrb[0].mxu0 %v45
    %v126 = vpop.f32.mrb[0].mxu0
    %v127 = vadd.f32 0.0, %v126
    %v128 = vpop.f32.mrb[0].mxu0
    %129 = vmatprep.mubr.f32.mxu0 0.0
    %130 = vmatmul.mubr.f32.gmra.mrb[0].mxu0 %v48
    %v131 = vpop.f32.mrb[0].mxu0
    %v132 = vadd.f32 0.0, %v131
    %v133 = vpop.f32.mrb[0].mxu0
    %134 = vmatprep.mubr.f32.mxu0 0.0
    %135 = vmatmul.mubr.f32.gmra.mrb[0].mxu0 %v51
    %v136 = vpop.f32.mrb[0].mxu0
    %v137 = vadd.f32 0.0, %v136
    %v138 = vpop.f32.mrb[0].mxu0
    %139 = vmatprep.mubr.f32.mxu0 0.0
    %140 = vmatmul.mubr.f32.gmra.mrb[0].mxu0 %v54
    %v141 = vpop.f32.mrb[0].mxu0
    %v142 = vadd.f32 0.0, %v141
    %v143 = vpop.f32.mrb[0].mxu0
    %144 = vdwg.mxu0
    %vm145 = vcmask 31744
    %v147 = vsel %vm145, %v35, 0
    %v150 = vsel %vm145, %v36, 0
    %v153 = vsel %vm145, %v37, 0
    %v156 = vsel %vm145, %v38, 0
    %vm158 = vcmask 1043456
    %v160 = vsel %vm158, %v33, 0
    %162 = vmatprep.subr.mxu0 0.0
    %163 = vmatpush1.msra.mxu0 %v160
    %164 = vmatprep.subr.mxu0 0.0
    %165 = vmatpush1.msra.mxu0 0.0
    %166 = vmatprep.subr.mxu0 0.0
    %167 = vmatpush1.msra.mxu0 0.0
    %168 = vmatprep.subr.mxu0 0.0
    %169 = vmatpush1.msra.mxu0 0.0
    %170 = vmatprep.subr.mxu0 0.0
    %171 = vmatpush1.msra.mxu0 0.0
    %172 = vmatprep.subr.mxu0 0.0
    %173 = vmatpush1.msra.mxu0 0.0
    %174 = vmatprep.subr.mxu0 0.0
    %175 = vmatpush1.msra.mxu0 0.0
    %176 = vmatprep.subr.mxu0 0.0
    %177 = vmatpush1.msra.mxu0 0.0
    %178 = vmatprep.subr.mxu0 0.0
    %179 = vmatpush1.msra.mxu0 0.0
    %180 = vmatprep.subr.mxu0 0.0
    %181 = vmatpush1.msra.mxu0 0.0
    %182 = vmatprep.subr.mxu0 0.0
    %183 = vmatpush1.msra.mxu0 0.0
    %184 = vmatprep.subr.mxu0 0.0
    %185 = vmatpush1.msra.mxu0 0.0
    %186 = vmatprep.subr.mxu0 0.0
    %187 = vmatpush1.msra.mxu0 0.0
    %188 = vmatprep.subr.mxu0 0.0
    %189 = vmatpush1.msra.mxu0 0.0
    %190 = vmatprep.subr.mxu0 0.0
    %191 = vmatpush1.msra.mxu0 0.0
    %192 = vmatprep.subr.mxu0 0.0
    %193 = vmatpush1.msra.mxu0 0.0
    %194 = vmatprep.subr.mxu0 0.0
    %195 = vmatpush1.msra.mxu0 0.0
    %196 = vmatprep.subr.mxu0 0.0
    %197 = vmatpush1.msra.mxu0 0.0
    %198 = vmatprep.subr.mxu0 0.0
    %199 = vmatpush1.msra.mxu0 0.0
    %200 = vmatprep.subr.mxu0 0.0
    %201 = vmatpush1.msra.mxu0 0.0
    %202 = vmatprep.subr.mxu0 0.0
    %203 = vmatpush1.msra.mxu0 0.0
    %204 = vmatprep.subr.mxu0 0.0
    %205 = vmatpush1.msra.mxu0 0.0
    %206 = vmatprep.subr.mxu0 0.0
    %207 = vmatpush1.msra.mxu0 0.0
    %208 = vmatprep.subr.mxu0 0.0
    %209 = vmatpush1.msra.mxu0 0.0
    %210 = vmatprep.subr.mxu0 0.0
    %211 = vmatpush1.msra.mxu0 0.0
    %212 = vmatprep.subr.mxu0 0.0
    %213 = vmatpush1.msra.mxu0 0.0
    %214 = vmatprep.subr.mxu0 0.0
    %215 = vmatpush1.msra.mxu0 0.0
    %216 = vmatprep.subr.mxu0 0.0
    %217 = vmatpush1.msra.mxu0 0.0
    %218 = vmatprep.subr.mxu0 0.0
    %219 = vmatpush1.msra.mxu0 0.0
    %220 = vmatprep.subr.mxu0 0.0
    %221 = vmatpush1.msra.mxu0 0.0
    %222 = vmatprep.subr.mxu0 0.0
    %223 = vmatpush1.msra.mxu0 0.0
    %224 = vmatprep.subr.mxu0 0.0
    %225 = vmatpush1.msra.mxu0 0.0
    %226 = vmatprep.mubr.f32.mxu0 0.0
    %227 = vmatmul.mubr.f32.gmra.mrb[0].mxu0 %v147
    %v228 = vpop.f32.mrb[0].mxu0
    %v229 = vadd.f32 %v127, %v228
    %v230 = vpop.f32.mrb[0].mxu0
    %231 = vmatprep.mubr.f32.mxu0 0.0
    %232 = vmatmul.mubr.f32.gmra.mrb[0].mxu0 %v150
    %v233 = vpop.f32.mrb[0].mxu0
    %v234 = vadd.f32 %v132, %v233
    %v235 = vpop.f32.mrb[0].mxu0
    %236 = vmatprep.mubr.f32.mxu0 0.0
    %237 = vmatmul.mubr.f32.gmra.mrb[0].mxu0 %v153
    %v238 = vpop.f32.mrb[0].mxu0
    %v239 = vadd.f32 %v137, %v238
    %v240 = vpop.f32.mrb[0].mxu0
    %241 = vmatprep.mubr.f32.mxu0 0.0
    %242 = vmatmul.mubr.f32.gmra.mrb[0].mxu0 %v156
    %v243 = vpop.f32.mrb[0].mxu0
    %v244 = vadd.f32 %v142, %v243
    %v245 = vpop.f32.mrb[0].mxu0
    %246 = vdwg.mxu0
    %v247 = vld [vmem:[%s4] sm:$0xff]
    %v248 = vld [vmem:[%s4 + $0x8] sm:$0xff]
    %v249 = vld [vmem:[%s4 + $0x10] sm:$0xff]
    %v250 = vld [vmem:[%s4 + $0x18] sm:$0xff]
    %252 = vset.pattern.permute.xlu0 0
    %253 = vperm.xlu0 %252, %v247
    %v254 = vpop.permute.xlu0 %253
    %257 = vset.pattern.permute.xlu0 0
    %258 = vperm.xlu0 %257, %v248
    %v259 = vpop.permute.xlu0 %258
    %262 = vset.pattern.permute.xlu0 0
    %263 = vperm.xlu0 %262, %v249
    %v264 = vpop.permute.xlu0 %263
    %267 = vset.pattern.permute.xlu0 0
    %268 = vperm.xlu0 %267, %v250
    %v269 = vpop.permute.xlu0 %268
    %v271 = vadd.f32 %v229, %v254
    %v272 = vadd.f32 %v234, %v259
    %v273 = vadd.f32 %v239, %v264
    %v274 = vadd.f32 %v244, %v269
    %v275 = vtanh.pop %v271
    %v276 = vtanh.pop %v272
    %v277 = vtanh.pop %v273
    %v278 = vtanh.pop %v274
    %v279 = vld [vmem:[%s5] sm:$0xf]
    %v280 = vld [vmem:[%s6] sm:$0xf]
    %v282 = vsel %vm43, %v280, 0
    %284 = vmatprep.subr.mxu0 0.0
    %285 = vmatpush1.msra.mxu0 %v58
    %286 = vmatprep.subr.mxu0 0.0
    %287 = vmatpush1.msra.mxu0 0.0
    %288 = vmatprep.subr.mxu0 0.0
    %289 = vmatpush1.msra.mxu0 0.0
    %290 = vmatprep.subr.mxu0 0.0
    %291 = vmatpush1.msra.mxu0 0.0
    %292 = vmatprep.subr.mxu0 0.0
    %293 = vmatpush1.msra.mxu0 0.0
    %294 = vmatprep.subr.mxu0 0.0
    %295 = vmatpush1.msra.mxu0 0.0
    %296 = vmatprep.subr.mxu0 0.0
    %297 = vmatpush1.msra.mxu0 0.0
    %298 = vmatprep.subr.mxu0 0.0
    %299 = vmatpush1.msra.mxu0 0.0
    %300 = vmatprep.subr.mxu0 0.0
    %301 = vmatpush1.msra.mxu0 0.0
    %302 = vmatprep.subr.mxu0 0.0
    %303 = vmatpush1.msra.mxu0 0.0
    %304 = vmatprep.subr.mxu0 0.0
    %305 = vmatpush1.msra.mxu0 0.0
    %306 = vmatprep.subr.mxu0 0.0
    %307 = vmatpush1.msra.mxu0 0.0
    %308 = vmatprep.subr.mxu0 0.0
    %309 = vmatpush1.msra.mxu0 0.0
    %310 = vmatprep.subr.mxu0 0.0
    %311 = vmatpush1.msra.mxu0 0.0
    %312 = vmatprep.subr.mxu0 0.0
    %313 = vmatpush1.msra.mxu0 0.0
    %314 = vmatprep.subr.mxu0 0.0
    %315 = vmatpush1.msra.mxu0 0.0
    %316 = vmatprep.subr.mxu0 0.0
    %317 = vmatpush1.msra.mxu0 0.0
    %318 = vmatprep.subr.mxu0 0.0
    %319 = vmatpush1.msra.mxu0 0.0
    %320 = vmatprep.subr.mxu0 0.0
    %321 = vmatpush1.msra.mxu0 0.0
    %322 = vmatprep.subr.mxu0 0.0
    %323 = vmatpush1.msra.mxu0 0.0
    %324 = vmatprep.subr.mxu0 0.0
    %325 = vmatpush1.msra.mxu0 0.0
    %326 = vmatprep.subr.mxu0 0.0
    %327 = vmatpush1.msra.mxu0 0.0
    %328 = vmatprep.subr.mxu0 0.0
    %329 = vmatpush1.msra.mxu0 0.0
    %330 = vmatprep.subr.mxu0 0.0
    %331 = vmatpush1.msra.mxu0 0.0
    %332 = vmatprep.subr.mxu0 0.0
    %333 = vmatpush1.msra.mxu0 0.0
    %334 = vmatprep.subr.mxu0 0.0
    %335 = vmatpush1.msra.mxu0 0.0
    %336 = vmatprep.subr.mxu0 0.0
    %337 = vmatpush1.msra.mxu0 0.0
    %338 = vmatprep.subr.mxu0 0.0
    %339 = vmatpush1.msra.mxu0 0.0
    %340 = vmatprep.subr.mxu0 0.0
    %341 = vmatpush1.msra.mxu0 0.0
    %342 = vmatprep.subr.mxu0 0.0
    %343 = vmatpush1.msra.mxu0 0.0
    %344 = vmatprep.subr.mxu0 0.0
    %345 = vmatpush1.msra.mxu0 0.0
    %346 = vmatprep.subr.mxu0 0.0
    %347 = vmatpush1.msra.mxu0 0.0
    %348 = vmatprep.mubr.f32.mxu0 0.0
    %349 = vmatmul.mubr.f32.gmra.mrb[0].mxu0 %v282
    %v350 = vpop.f32.mrb[0].mxu0
    %v351 = vadd.f32 0.0, %v350
    %v352 = vpop.f32.mrb[0].mxu0
    %353 = vdwg.mxu0
    %v355 = vsel %vm145, %v279, 0
    %357 = vmatprep.subr.mxu0 0.0
    %358 = vmatpush1.msra.mxu0 %v160
    %359 = vmatprep.subr.mxu0 0.0
    %360 = vmatpush1.msra.mxu0 0.0
    %361 = vmatprep.subr.mxu0 0.0
    %362 = vmatpush1.msra.mxu0 0.0
    %363 = vmatprep.subr.mxu0 0.0
    %364 = vmatpush1.msra.mxu0 0.0
    %365 = vmatprep.subr.mxu0 0.0
    %366 = vmatpush1.msra.mxu0 0.0
    %367 = vmatprep.subr.mxu0 0.0
    %368 = vmatpush1.msra.mxu0 0.0
    %369 = vmatprep.subr.mxu0 0.0
    %370 = vmatpush1.msra.mxu0 0.0
    %371 = vmatprep.subr.mxu0 0.0
    %372 = vmatpush1.msra.mxu0 0.0
    %373 = vmatprep.subr.mxu0 0.0
    %374 = vmatpush1.msra.mxu0 0.0
    %375 = vmatprep.subr.mxu0 0.0
    %376 = vmatpush1.msra.mxu0 0.0
    %377 = vmatprep.subr.mxu0 0.0
    %378 = vmatpush1.msra.mxu0 0.0
    %379 = vmatprep.subr.mxu0 0.0
    %380 = vmatpush1.msra.mxu0 0.0
    %381 = vmatprep.subr.mxu0 0.0
    %382 = vmatpush1.msra.mxu0 0.0
    %383 = vmatprep.subr.mxu0 0.0
    %384 = vmatpush1.msra.mxu0 0.0
    %385 = vmatprep.subr.mxu0 0.0
    %386 = vmatpush1.msra.mxu0 0.0
    %387 = vmatprep.subr.mxu0 0.0
    %388 = vmatpush1.msra.mxu0 0.0
    %389 = vmatprep.subr.mxu0 0.0
    %390 = vmatpush1.msra.mxu0 0.0
    %391 = vmatprep.subr.mxu0 0.0
    %392 = vmatpush1.msra.mxu0 0.0
    %393 = vmatprep.subr.mxu0 0.0
    %394 = vmatpush1.msra.mxu0 0.0
    %395 = vmatprep.subr.mxu0 0.0
    %396 = vmatpush1.msra.mxu0 0.0
    %397 = vmatprep.subr.mxu0 0.0
    %398 = vmatpush1.msra.mxu0 0.0
    %399 = vmatprep.subr.mxu0 0.0
    %400 = vmatpush1.msra.mxu0 0.0
    %401 = vmatprep.subr.mxu0 0.0
    %402 = vmatpush1.msra.mxu0 0.0
    %403 = vmatprep.subr.mxu0 0.0
    %404 = vmatpush1.msra.mxu0 0.0
    %405 = vmatprep.subr.mxu0 0.0
    %406 = vmatpush1.msra.mxu0 0.0
    %407 = vmatprep.subr.mxu0 0.0
    %408 = vmatpush1.msra.mxu0 0.0
    %409 = vmatprep.subr.mxu0 0.0
    %410 = vmatpush1.msra.mxu0 0.0
    %411 = vmatprep.subr.mxu0 0.0
    %412 = vmatpush1.msra.mxu0 0.0
    %413 = vmatprep.subr.mxu0 0.0
    %414 = vmatpush1.msra.mxu0 0.0
    %415 = vmatprep.subr.mxu0 0.0
    %416 = vmatpush1.msra.mxu0 0.0
    %417 = vmatprep.subr.mxu0 0.0
    %418 = vmatpush1.msra.mxu0 0.0
    %419 = vmatprep.subr.mxu0 0.0
    %420 = vmatpush1.msra.mxu0 0.0
    %421 = vmatprep.mubr.f32.mxu0 0.0
    %422 = vmatmul.mubr.f32.gmra.mrb[0].mxu0 %v355
    %v423 = vpop.f32.mrb[0].mxu0
    %v424 = vadd.f32 %v351, %v423
    %v425 = vpop.f32.mrb[0].mxu0
    %426 = vdwg.mxu0
    %v427 = vld [vmem:[%s7] sm:$0xf]
    %vm428 = vcmask 261120
    %v430 = vsel %vm428, %v427, 0
    %432 = vmatprep.subr.mxu0 0.0
    %433 = vmatpush1.msra.mxu0 %v275
    %434 = vmatprep.subr.mxu0 0.0
    %435 = vmatpush1.msra.mxu0 %v276
    %436 = vmatprep.subr.mxu0 0.0
    %437 = vmatpush1.msra.mxu0 %v277
    %438 = vmatprep.subr.mxu0 0.0
    %439 = vmatpush1.msra.mxu0 %v278
    %440 = vmatprep.subr.mxu0 0.0
    %441 = vmatpush1.msra.mxu0 0.0
    %442 = vmatprep.subr.mxu0 0.0
    %443 = vmatpush1.msra.mxu0 0.0
    %444 = vmatprep.subr.mxu0 0.0
    %445 = vmatpush1.msra.mxu0 0.0
    %446 = vmatprep.subr.mxu0 0.0
    %447 = vmatpush1.msra.mxu0 0.0
    %448 = vmatprep.subr.mxu0 0.0
    %449 = vmatpush1.msra.mxu0 0.0
    %450 = vmatprep.subr.mxu0 0.0
    %451 = vmatpush1.msra.mxu0 0.0
    %452 = vmatprep.subr.mxu0 0.0
    %453 = vmatpush1.msra.mxu0 0.0
    %454 = vmatprep.subr.mxu0 0.0
    %455 = vmatpush1.msra.mxu0 0.0
    %456 = vmatprep.subr.mxu0 0.0
    %457 = vmatpush1.msra.mxu0 0.0
    %458 = vmatprep.subr.mxu0 0.0
    %459 = vmatpush1.msra.mxu0 0.0
    %460 = vmatprep.subr.mxu0 0.0
    %461 = vmatpush1.msra.mxu0 0.0
    %462 = vmatprep.subr.mxu0 0.0
    %463 = vmatpush1.msra.mxu0 0.0
    %464 = vmatprep.subr.mxu0 0.0
    %465 = vmatpush1.msra.mxu0 0.0
    %466 = vmatprep.subr.mxu0 0.0
    %467 = vmatpush1.msra.mxu0 0.0
    %468 = vmatprep.subr.mxu0 0.0
    %469 = vmatpush1.msra.mxu0 0.0
    %470 = vmatprep.subr.mxu0 0.0
    %471 = vmatpush1.msra.mxu0 0.0
    %472 = vmatprep.subr.mxu0 0.0
    %473 = vmatpush1.msra.mxu0 0.0
    %474 = vmatprep.subr.mxu0 0.0
    %475 = vmatpush1.msra.mxu0 0.0
    %476 = vmatprep.subr.mxu0 0.0
    %477 = vmatpush1.msra.mxu0 0.0
    %478 = vmatprep.subr.mxu0 0.0
    %479 = vmatpush1.msra.mxu0 0.0
    %480 = vmatprep.subr.mxu0 0.0
    %481 = vmatpush1.msra.mxu0 0.0
    %482 = vmatprep.subr.mxu0 0.0
    %483 = vmatpush1.msra.mxu0 0.0
    %484 = vmatprep.subr.mxu0 0.0
    %485 = vmatpush1.msra.mxu0 0.0
    %486 = vmatprep.subr.mxu0 0.0
    %487 = vmatpush1.msra.mxu0 0.0
    %488 = vmatprep.subr.mxu0 0.0
    %489 = vmatpush1.msra.mxu0 0.0
    %490 = vmatprep.subr.mxu0 0.0
    %491 = vmatpush1.msra.mxu0 0.0
    %492 = vmatprep.subr.mxu0 0.0
    %493 = vmatpush1.msra.mxu0 0.0
    %494 = vmatprep.subr.mxu0 0.0
    %495 = vmatpush1.msra.mxu0 0.0
    %496 = vmatprep.mubr.f32.mxu0 0.0
    %497 = vmatmul.mubr.f32.gmra.mrb[0].mxu0 %v430
    %v498 = vpop.f32.mrb[0].mxu0
    %v499 = vadd.f32 0.0, %v498
    %v500 = vpop.f32.mrb[0].mxu0
    %501 = vdwg.mxu0
    %v502 = vadd.f32 %v424, %v499
    %v503 = vld [vmem:[%s8] sm:$0xf]
    %505 = vset.pattern.permute.xlu0 0
    %506 = vperm.xlu0 %505, %v503
    %v507 = vpop.permute.xlu0 %506
    %v509 = vadd.f32 %v502, %v507
    %vm510 = vcmask 125952
    %511 = vst.msk [vmem:[#allocation2] sm:$0xf] %vm510, %v509
    // Predicated region
    $region38: #{tpu_custom_call.1} parent=1 // pred_check
      _
    $region39: #{tpu_custom_call.1} parent=1 // pred_check_branch
      %513 = sbr.rel (0) target = $region41
    $region40: #{tpu_custom_call.1} parent=1 // pred_region
      %s515 = ssub.s32 64, 64
      %516 = vsyncadd [#allocation3], %s515
      %s518 = sshll.u32 [#allocation2], 4
      %s519 = int_to_ptr.vmem [resolvable:$true] %s518
      %521 = dma.vmem_to_hbm [thread:$0]  %s519, 64, %s9, [#allocation3]
    $region41: #{tpu_custom_call.1} parent=1 // pred_fallthru
      _
    // Predicated region
    $region42: #{tpu_custom_call.1} parent=1 // pred_check
      _
    $region43: #{tpu_custom_call.1} parent=1 // pred_check_branch
      %523 = sbr.rel (0) target = $region45
    $region44: #{tpu_custom_call.1} parent=1 // pred_region
      %524 = dma.done [#allocation3], 64
    $region45: #{tpu_custom_call.1} parent=1 // pred_fallthru
      _
    %525 = vsyncpa [#allocation3], 1

</llo_original>
